<compile_context>
chip_gen: v5e
topology: v5e:2x2
jax: 0.10.0
libtpu: 0.0.40
codegen_flags: <defaults>
</compile_context>

<pallas_src>
import jax
import jax.numpy as jnp
from jax.experimental import pallas as pl
from jax.experimental.pallas import tpu as pltpu

_LANE = 128


def _silu_kernel(x_ref, o_ref):
    # SiLU(x) = x * sigmoid(x) = x * 1/(1 + exp(-x)).
    # Math in f32 (v5e has no bf16 VPU/EUP path); exact division keeps parity
    # with the PyTorch reference. Memory-bound op: exp/div cost is hidden
    # under the HBM DMA.
    x = x_ref[...].astype(jnp.float32)
    y = x * (1.0 / (1.0 + jnp.exp(-x)))
    o_ref[...] = y.astype(o_ref.dtype)


def _sublane_multiple(itemsize):
    # Native packed sublane tile: (8,128) f32, (16,128) bf16, (32,128) int8/fp8.
    if itemsize >= 4:
        return 8
    if itemsize == 2:
        return 16
    return 32


def _pick_tiles(rows, cols, itemsize, sub, target_tile_bytes):
    """Pick (block_rows, block_cols) so one tile is ~target_tile_bytes."""
    # Column tile: keep the full lane-dense width unless even a `sub`-row strip
    # would blow the byte budget (huge hidden dims, e.g. Llama H=14336/28672);
    # then split on 128-lane boundaries so VMEM use is bounded independently
    # of the hidden dim.
    if cols * sub * itemsize <= target_tile_bytes:
        block_cols = cols
    else:
        block_cols = (target_tile_bytes // (sub * itemsize)) // _LANE * _LANE
        block_cols = int(max(_LANE, min(block_cols, cols)))

    if rows <= sub:
        # Full extent along rows is always a legal block shape.
        block_rows = rows
    else:
        block_rows = target_tile_bytes // (block_cols * itemsize)
        block_rows = int(min(block_rows, rows))
        block_rows = max(sub, (block_rows // sub) * sub)
        # Guarantee >= 2 grid steps so the "parallel" axis can actually be
        # sharded across v7x's two TensorCores (neutral on v5e/v6e).
        if (pl.cdiv(rows, block_rows) == 1 and pl.cdiv(cols, block_cols) == 1
                and rows >= 2 * sub):
            half = (rows + 1) // 2
            block_rows = max(sub, ((half + sub - 1) // sub) * sub)
    return block_rows, block_cols


def silu_pallas(x, *, target_tile_bytes=4 << 20, vmem_limit_bytes=48 << 20):
    """Apply SiLU elementwise to an array of any rank."""
    orig_shape = x.shape
    dtype = x.dtype
    itemsize = jnp.dtype(dtype).itemsize
    sub = _sublane_multiple(itemsize)
    n = x.size

    cols = orig_shape[-1] if x.ndim >= 1 else 1
    if x.ndim >= 1 and cols % _LANE == 0:
        # Last dim already lane-dense: collapse leading dims into rows.
        rows = n // cols
        x2 = x.reshape(rows, cols)
        n_valid = None  # no padding to strip
    else:
        # Last dim not a multiple of 128: flatten + zero-pad into a lane-dense
        # (rows, 8*128) slab so stores are full unmasked `vst`s; padding is
        # sliced off afterwards. sigmoid(0)*0 == 0, so padded lanes are benign.
        width = sub * _LANE
        rows = max(1, pl.cdiv(n, width))
        padded = rows * width
        xf = jnp.ravel(x)
        if padded > n:
            xf = jnp.pad(xf, (0, padded - n))
        x2 = xf.reshape(rows, width)
        cols = width
        n_valid = n

    block_rows, block_cols = _pick_tiles(rows, cols, itemsize, sub,
                                         target_tile_bytes)
    grid = (pl.cdiv(rows, block_rows), pl.cdiv(cols, block_cols))

    out2 = pl.pallas_call(
        _silu_kernel,
        out_shape=jax.ShapeDtypeStruct((rows, cols), dtype),
        grid_spec=pltpu.PrefetchScalarGridSpec(
            num_scalar_prefetch=0,
            grid=grid,
            in_specs=[pl.BlockSpec((block_rows, block_cols),
                                   lambda i, j: (i, j))],
            out_specs=pl.BlockSpec((block_rows, block_cols),
                                   lambda i, j: (i, j)),
        ),
        compiler_params=pltpu.CompilerParams(
            dimension_semantics=("parallel", "parallel"),
            vmem_limit_bytes=vmem_limit_bytes,
        ),
        cost_estimate=pl.CostEstimate(
            flops=4 * n,
            transcendentals=n,
            bytes_accessed=2 * n * itemsize,
        ),
    )(x2)

    if n_valid is not None:
        return out2.reshape(-1)[:n_valid].reshape(orig_shape)
    return out2.reshape(orig_shape)


# ---------------- pure-JAX reference (mirrors the PyTorch module) ------------
def silu_reference(x):
    return x * (1.0 / (1.0 + jnp.exp(-x)))


if __name__ == "__main__":
    # SiLU input in the Llama FFN context is (batch, seq, ffn_hidden).
    B, S, H = 2, 8, 256
    x = jax.random.normal(jax.random.PRNGKey(0), (B, S, H), jnp.float32) * 3.0

    out = jax.block_until_ready(silu_pallas(x))
    ref = silu_reference(x)
    assert out.shape == x.shape
    assert jnp.allclose(out, ref, rtol=1e-5, atol=1e-5), \
        "mismatch vs reference (lane-dense path)"

    # Awkward last dim (not a multiple of 128) exercises the flatten+pad path.
    x2 = jax.random.normal(jax.random.PRNGKey(1), (2, 7, 100), jnp.float32)
    out2 = jax.block_until_ready(silu_pallas(x2))
    ref2 = silu_reference(x2)
    assert out2.shape == x2.shape
    assert jnp.allclose(out2, ref2, rtol=1e-5, atol=1e-5), \
        "mismatch vs reference (pad path)"

    print("KERNEL_OK")
</pallas_src>

<mosaic_0001>
module attributes {stable_mosaic.version = 11 : i64} {
  func.func @_silu_kernel(%arg0: i32, %arg1: i32, %arg2: memref<8x256xf32, #tpu.memory_space<vmem>>, %arg3: memref<8x256xf32, #tpu.memory_space<vmem>>) attributes {dimension_semantics = [#tpu.dimension_semantics<parallel>, #tpu.dimension_semantics<parallel>], iteration_bounds = array<i64: 2, 1>, scalar_prefetch = 0 : i64, scratch_operands = 0 : i64, tpu.core_type = #tpu.core_type<tc>, window_params = [{transform_indices = @transform_0, window_bounds = array<i64: 8, 256>}, {transform_indices = @transform_1, window_bounds = array<i64: 8, 256>}]} {
    %c0 = arith.constant 0 : index
    %c0_0 = arith.constant 0 : index
    %0 = vector.load %arg2[%c0, %c0_0] : memref<8x256xf32, #tpu.memory_space<vmem>>, vector<8x256xf32>
    %cst = arith.constant 0.000000e+00 : f32
    %1 = vector.broadcast %cst : f32 to vector<8x256xf32>
    %2 = arith.subf %1, %0 : vector<8x256xf32>
    %3 = math.exp %2 : vector<8x256xf32>
    %cst_1 = arith.constant 1.000000e+00 : f32
    %4 = vector.broadcast %cst_1 : f32 to vector<8x256xf32>
    %5 = arith.addf %4, %3 : vector<8x256xf32>
    %cst_2 = arith.constant 1.000000e+00 : f32
    %6 = vector.broadcast %cst_2 : f32 to vector<8x256xf32>
    %7 = arith.divf %6, %5 : vector<8x256xf32>
    %8 = arith.mulf %0, %7 : vector<8x256xf32>
    %c0_3 = arith.constant 0 : index
    %c0_4 = arith.constant 0 : index
    %9 = vector.load %arg3[%c0_3, %c0_4] : memref<8x256xf32, #tpu.memory_space<vmem>>, vector<8x256xf32>
    tpu.vector_store %arg3[%c0_3, %c0_4], %8 {strides = array<i32>} : memref<8x256xf32, #tpu.memory_space<vmem>>, vector<8x256xf32>,
    return
  }
  func.func @transform_0(%arg0: i32, %arg1: i32) -> (i32, i32) {
    %c0_i32 = arith.constant 0 : i32
    return %arg0, %arg1 : i32, i32
  }
  func.func @transform_1(%arg0: i32, %arg1: i32) -> (i32, i32) {
    %c0_i32 = arith.constant 0 : i32
    return %arg0, %arg1 : i32, i32
  }
}

</mosaic_0001>

<llo_original>
// kernel: tpu_custom_call.1
$region0: #{tpu_custom_call.1}
  #allocation0 [shape = 'u32[]', space=smem, size = 0x4, offset = 0x4, fixed_abs, tag = 'smem constant byte address 0x4 - core index']
  #allocation1 [shape = 'u32[72,128]{1,0:T(1,128)}', space=vmem, size = 0x9000, scoped, tag = 'internal scratch']
  %s0 = inlined_call_operand.hbm [shape: f32[16,256], index: 0, kind: input, shape index: {}]
  %s1 = inlined_call_operand.hbm [shape: f32[16,256], index: 1, kind: output, shape index: {}]
  %s2 = sld [smem:[#allocation0]]
  $region41: #{tpu_custom_call.1} parent=0
    _
  %s4 = ssub.s32 1, %s2
  %s5 = scalar_select 0, %s4, %s2
  $region1: #{tpu_custom_call.1} parent=0
    #allocation2 [shape = 'u8[16384]{0}', space=vmem, size = 0x4000, scoped, tag = 'input window, operand 0']
    #allocation3 [shape = 's32[2]{0}', space=sflag, size = 0x8, scoped, tag = 'scoped memory for tpu_custom_call.1']
    #allocation4 [shape = 's32[2]{0}', space=sflag, size = 0x8, scoped, tag = 'scoped memory for tpu_custom_call.1']
    #allocation5 [shape = 'u8[16384]{0}', space=vmem, size = 0x4000, scoped, tag = 'output window, operand 0']
    %6 = vsyncpa [#allocation3], 0
    %s7 = scalar_lea.sflag [#allocation3], 1
    %8 = vsyncpa %s7, 0
    %9 = vsyncpa [#allocation4], 0
    %s10 = scalar_lea.sflag [#allocation4], 1
    %11 = vsyncpa %s10, 0
    loop: start=0, step=1, limit=4
    $region2: #{tpu_custom_call.1} parent=1 // loop_pre_header
      _
    $region3: #{tpu_custom_call.1} parent=1 // loop_header
      %s13 = sphi 0, %s17
      %p14 = scmp.ge.s32.totalorder %s13, 4
      %s20 = sphi 0, %s32
      %s21 = sphi 0, %s28
      %s22 = sphi 0, %s20
      %s23 = sphi 0, %s21
      %s24 = sphi 0, %s22
      %s25 = sphi 0, %s23
      %s37 = sphi 0, %s39
      %s40 = sphi 0, %s37
      %s41 = sphi 0, %s40
      %s57 = sphi 0, %s41
      %s65 = sphi 0, %s67
      %s68 = sphi 0, %s65
      %s69 = sphi 0, %s68
      %s85 = sphi 0, %s69
    $region4: #{tpu_custom_call.1} parent=1 // loop_header_branch
      %16 = sbr.rel (%p14) target = $region8
    $region5: #{tpu_custom_call.1} parent=1 // loop_body
      %s18 = ssub.s32 %s13, 1
      %s19 = ssub.s32 %s13, 2
      %s26 = sadd.s32 1, %s21
      %p27 = scmp.ge.s32.totalorder %s26, 1
      %s28 = scalar_select %p27, 0, %s26
      %s29 = sadd.s32 1, %s20
      %s30 = scalar_select %p27, %s29, %s20
      %p31 = scmp.ge.s32.totalorder %s30, 2
      %s32 = scalar_select %p31, 0, %s30
      %s33 = ssub.s32 %s20, %s32
      %s34 = ssub.s32 %s21, %s28
      %s35 = sor.u32 %s33, %s34
      %p36 = scmp.eq.s32.totalorder %s35, 0
      %s38 = sadd.s32 %s37, 1
      %s39 = scalar_select %p36, %s37, %s38
      %p42 = pneg %p36
      %p43 = scmp.eq.s32.totalorder %s13, 1
      %p44 = por %p42, %p43
      %p45 = scmp.ne.s32.totalorder %s37, %s40
      %p46 = scmp.eq.s32.totalorder %s13, 0
      %p47 = por %p45, %p46
      %p48 = scmp.ne.s32.totalorder %s37, %s40
      %p49 = scmp.eq.s32.totalorder %s18, 1
      %p50 = por %p48, %p49
      %p51 = scmp.ne.s32.totalorder %s40, %s41
      %p52 = scmp.eq.s32.totalorder %s18, 0
      %p53 = por %p51, %p52
      %p54 = scmp.ne.s32.totalorder %s40, %s41
      %p55 = scmp.eq.s32.totalorder %s19, 1
      %p56 = por %p54, %p55
      %p58 = scmp.ne.s32.totalorder %s41, %s57
      %p59 = scmp.eq.s32.totalorder %s19, 0
      %p60 = por %p58, %p59
      %s61 = ssub.s32 %s20, %s32
      %s62 = ssub.s32 %s21, %s28
      %s63 = sor.u32 %s61, %s62
      %p64 = scmp.eq.s32.totalorder %s63, 0
      %s66 = sadd.s32 %s65, 1
      %s67 = scalar_select %p64, %s65, %s66
      %p70 = pneg %p64
      %p71 = scmp.eq.s32.totalorder %s13, 1
      %p72 = por %p70, %p71
      %p73 = scmp.ne.s32.totalorder %s65, %s68
      %p74 = scmp.eq.s32.totalorder %s13, 0
      %p75 = por %p73, %p74
      %p76 = scmp.ne.s32.totalorder %s65, %s68
      %p77 = scmp.eq.s32.totalorder %s18, 1
      %p78 = por %p76, %p77
      %p79 = scmp.ne.s32.totalorder %s68, %s69
      %p80 = scmp.eq.s32.totalorder %s18, 0
      %p81 = por %p79, %p80
      %p82 = scmp.ne.s32.totalorder %s68, %s69
      %p83 = scmp.eq.s32.totalorder %s19, 1
      %p84 = por %p82, %p83
      %p86 = scmp.ne.s32.totalorder %s69, %s85
      %p87 = scmp.eq.s32.totalorder %s19, 0
      %p88 = por %p86, %p87
      %p89 = scmp.le.s32.totalorder 1, %s13
      %p90 = scmp.lt.s32.totalorder %s13, 3
      %p91 = pnand %p89, %p90
      %p92 = pneg %p91
      // Predicated region
      $region9: #{tpu_custom_call.1} parent=5 // pred_check
        _
      $region10: #{tpu_custom_call.1} parent=5 // pred_check_branch
        %94 = sbr.rel (%p91) target = $region12
      $region11: #{tpu_custom_call.1} parent=5 // pred_region
        %s95 = ssub.s32 %s13, 1
      $region12: #{tpu_custom_call.1} parent=5 // pred_fallthru
        _
      %p96 = scmp.lt.s32.totalorder %s13, 2
      // Predicated region
      $region13: #{tpu_custom_call.1} parent=5 // pred_check
        %p97 = pneg %p96
      $region14: #{tpu_custom_call.1} parent=5 // pred_check_branch
        %99 = sbr.rel (%p97) target = $region16
      $region15: #{tpu_custom_call.1} parent=5 // pred_region
        // Predicated region
        $region17: #{tpu_custom_call.1} parent=15 // pred_check
          %p100 = pneg %p47
        $region18: #{tpu_custom_call.1} parent=15 // pred_check_branch
          %102 = sbr.rel (%p100) target = $region20
        $region19: #{tpu_custom_call.1} parent=15 // pred_region
          %s103 = sand.u32 %s37, 1
          %s104 = scalar_lea.sflag [#allocation3], %s103
          %s105 = sand.u32 %s37, 1
          %s106 = smul.addr %s105, 16
          %s107 = scalar_lea.vmem [#allocation2], %s106
          %s108 = smul.u32 2, %s21
          %110 = vsyncadd %s104, 0
          %s111 = smul.addr %s20, 2
          %s112 = sadd.s32 %s108, %s111
          %s113 = smul.addr %s112, 8
          %s114 = scalar_lea.hbm %s0, %s113
          %s116 = sshll.u32 %s114, 4
          %s117 = int_to_ptr.hbm [resolvable:$true] %s116
          %s118 = sshll.u32 %s107, 4
          %s119 = int_to_ptr.vmem [resolvable:$true] %s118
          %121 = dma.hbm_to_vmem [thread:$0]  %s117, 256, %s119, %s104
        $region20: #{tpu_custom_call.1} parent=15 // pred_fallthru
          _
      $region16: #{tpu_custom_call.1} parent=5 // pred_fallthru
        _
      %p122 = scmp.le.s32.totalorder 1, %s13
      %p123 = scmp.lt.s32.totalorder %s13, 3
      %p124 = pnand %p122, %p123
      %p125 = pneg %p124
      // Predicated region
      $region21: #{tpu_custom_call.1} parent=5 // pred_check
        _
      $region22: #{tpu_custom_call.1} parent=5 // pred_check_branch
        %127 = sbr.rel (%p124) target = $region24
      $region23: #{tpu_custom_call.1} parent=5 // pred_region
        %s128 = ssub.s32 %s13, 1
        %s129 = sand.u32 %s40, 1
        %s130 = scalar_lea.sflag [#allocation3], %s129
        %s131 = sand.u32 %s40, 1
        %s132 = smul.addr %s131, 16
        %s133 = scalar_lea.vmem [#allocation2], %s132
        // Predicated region
        $region25: #{tpu_custom_call.1} parent=23 // pred_check
          %p134 = pneg %p53
        $region26: #{tpu_custom_call.1} parent=23 // pred_check_branch
          %136 = sbr.rel (%p134) target = $region28
        $region27: #{tpu_custom_call.1} parent=23 // pred_region
          %138 = dma.done %s130, 256
        $region28: #{tpu_custom_call.1} parent=23 // pred_fallthru
          _
        %s139 = sand.u32 %s40, 1
        %s140 = scalar_lea.sflag [#allocation3], %s139
        %s141 = sand.u32 %s40, 1
        %s142 = smul.addr %s141, 16
        %s143 = scalar_lea.vmem [#allocation2], %s142
        %p144 = pneg %p53
        %p145 = pneg %p50
        %p146 = pneg %p81
        %p147 = pneg %p78
        %s148 = sand.u32 %s68, 1
        %s149 = scalar_lea.sflag [#allocation4], %s148
        %s150 = sand.u32 %s68, 1
        %s151 = smul.addr %s150, 16
        %s152 = scalar_lea.vmem [#allocation5], %s151
        %s153 = smul.u32 2, %s23
        %s154 = smul.u32 2, %s23
        %v155 = vld [vmem:[%s133] sm:$0xff]
        %v156 = vld [vmem:[%s133 + $0x8] sm:$0xff]
        %v157 = vsub.f32 0.0, %v155
        %v158 = vsub.f32 0.0, %v156
        %v159 = vmul.f32 %v157, 1.442695
        %v160 = vpow.pop %v159
        %v161 = vmul.f32 %v158, 1.442695
        %v162 = vpow.pop %v161
        %v163 = vadd.f32 %v160, 1.0
        %v164 = vadd.f32 %v162, 1.0
        %v165 = vrcp.pop %v163
        %v166 = vmul.f32 %v163, %v165
        %v167 = vsub.f32 1.0, %v166
        %v168 = vmul.f32 %v165, %v167
        %v169 = vadd.f32 %v165, %v168
        %vm170 = vweird.f32 %v163
        %vm171 = vweird.f32 %v165
        %vm172 = vmor %vm170, %vm171
        %v173 = vsel %vm172, %v165, %v169
        %v174 = vand.u32 2147483647, %v163
        %vm175 = vcmp.eq.f32.partialorder %v174, 8.507059e+37
        %v176 = vand.u32 %v163, 2147483648
        %v177 = vor.u32 1.1754944e-38, %v176
        %v178 = vsel %vm175, %v177, %v173
        %v179 = vmul.f32 1.0, %v178
        %v180 = vrcp.pop %v164
        %v181 = vmul.f32 %v164, %v180
        %v182 = vsub.f32 1.0, %v181
        %v183 = vmul.f32 %v180, %v182
        %v184 = vadd.f32 %v180, %v183
        %vm185 = vweird.f32 %v164
        %vm186 = vweird.f32 %v180
        %vm187 = vmor %vm185, %vm186
        %v188 = vsel %vm187, %v180, %v184
        %v189 = vand.u32 2147483647, %v164
        %vm190 = vcmp.eq.f32.partialorder %v189, 8.507059e+37
        %v191 = vand.u32 %v164, 2147483648
        %v192 = vor.u32 1.1754944e-38, %v191
        %v193 = vsel %vm190, %v192, %v188
        %v194 = vmul.f32 1.0, %v193
        %v195 = vmul.f32 %v155, %v179
        %v196 = vmul.f32 %v156, %v194
        %197 = vst [vmem:[%s152] sm:$0xff] %v195
        %198 = vst [vmem:[%s152 + $0x8] sm:$0xff] %v196
        %s199 = sand.u32 %s68, 1
        %s200 = scalar_lea.sflag [#allocation4], %s199
        %s201 = sand.u32 %s68, 1
        %s202 = smul.addr %s201, 16
        %s203 = scalar_lea.vmem [#allocation5], %s202
        // Predicated region
        $region29: #{tpu_custom_call.1} parent=23 // pred_check
          %p204 = pneg %p78
        $region30: #{tpu_custom_call.1} parent=23 // pred_check_branch
          %206 = sbr.rel (%p204) target = $region32
        $region31: #{tpu_custom_call.1} parent=23 // pred_region
          %s207 = smul.u32 2, %s23
          %209 = vsyncadd %s200, 0
          %s210 = smul.addr %s22, 2
          %s211 = sadd.s32 %s207, %s210
          %s212 = smul.addr %s211, 8
          %s213 = scalar_lea.hbm %s1, %s212
          %s215 = sshll.u32 %s203, 4
          %s216 = int_to_ptr.vmem [resolvable:$true] %s215
          %s217 = sshll.u32 %s213, 4
          %s218 = int_to_ptr.hbm [resolvable:$true] %s217
          %220 = dma.vmem_to_hbm [thread:$0]  %s216, 256, %s218, %s200
        $region32: #{tpu_custom_call.1} parent=23 // pred_fallthru
          _
      $region24: #{tpu_custom_call.1} parent=5 // pred_fallthru
        _
      %p221 = scmp.le.s32.totalorder 2, %s13
      // Predicated region
      $region33: #{tpu_custom_call.1} parent=5 // pred_check
        %p222 = pneg %p221
      $region34: #{tpu_custom_call.1} parent=5 // pred_check_branch
        %224 = sbr.rel (%p222) target = $region36
      $region35: #{tpu_custom_call.1} parent=5 // pred_region
        %s225 = ssub.s32 %s13, 2
        // Predicated region
        $region37: #{tpu_custom_call.1} parent=35 // pred_check
          %p226 = pneg %p84
        $region38: #{tpu_custom_call.1} parent=35 // pred_check_branch
          %228 = sbr.rel (%p226) target = $region40
        $region39: #{tpu_custom_call.1} parent=35 // pred_region
          %s229 = sand.u32 %s69, 1
          %s230 = scalar_lea.sflag [#allocation4], %s229
          %s231 = sand.u32 %s69, 1
          %s232 = smul.addr %s231, 16
          %s233 = scalar_lea.vmem [#allocation5], %s232
          %235 = dma.done %s230, 256
        $region40: #{tpu_custom_call.1} parent=35 // pred_fallthru
          _
      $region36: #{tpu_custom_call.1} parent=5 // pred_fallthru
        _
    $region6: #{tpu_custom_call.1} parent=1 // loop_footer
      %s17 = sadd.s32 1, %s13
    $region7: #{tpu_custom_call.1} parent=1 // loop_footer_branch
      %12 = sbr.rel target = $region3
    $region8: #{tpu_custom_call.1} parent=1 // loop_exit
      _
    %236 = vsyncpa [#allocation3], 1
    %s237 = scalar_lea.sflag [#allocation3], 1
    %238 = vsyncpa %s237, 1
    %239 = vsyncpa [#allocation4], 1
    %s240 = scalar_lea.sflag [#allocation4], 1
    %241 = vsyncpa %s240, 1

</llo_original>
